<compile_context>
chip_gen: v7x
topology: tpu7x:2x2x1
jax: 0.10.0
libtpu: 0.0.40
codegen_flags: <defaults>
</compile_context>

<pallas_src>
import jax
import jax.numpy as jnp
from jax.experimental import pallas as pl
from jax.experimental.pallas import tpu as pltpu

IN_PAD = 32     # 30 one-hot slots (10 tokens x 3 classes) padded to 32 lanes
HID = 128       # hidden dim 100 padded to 128 lanes
OUT_PAD = 128   # 9 logits padded to 128 lanes (lane-dense store)
NUM_OUT = 9


def _round_up(x, m):
    return (x + m - 1) // m * m


def qmodel_kernel(idx_ref, w1_ref, b1_ref, w2_ref, b2_ref, w3_ref, b3_ref,
                  out_ref):
    # Rebuild the (TB, 32) one-hot in-kernel from int8 repeated token indices:
    # lane 3t+c is 1 iff token t has class c. Padding lanes/rows carry -1 -> 0.
    idx = idx_ref[...].astype(jnp.int32)
    cls = jax.lax.broadcasted_iota(jnp.int32, idx.shape, 1) % 3
    g = jnp.where(idx == cls, 1.0, 0.0).astype(jnp.bfloat16)

    # layer1 (embedding folded in: W1' = kron(I_10, relu(E)) @ W1) + ReLU
    h = jnp.dot(g, w1_ref[...], preferred_element_type=jnp.float32) + b1_ref[...]
    h = jnp.maximum(h, 0.0)
    # layer2 + ReLU
    h = jnp.dot(h.astype(jnp.bfloat16), w2_ref[...],
                preferred_element_type=jnp.float32) + b2_ref[...]
    h = jnp.maximum(h, 0.0)
    # layer3
    logits = jnp.dot(h.astype(jnp.bfloat16), w3_ref[...],
                     preferred_element_type=jnp.float32) + b3_ref[...]

    # softmax over the 9 real classes; lanes 9..127 are padding -> masked out
    lane = jax.lax.broadcasted_iota(jnp.int32, logits.shape, 1)
    logits = jnp.where(lane < NUM_OUT, logits, -1e30)
    m = jnp.max(logits, axis=1, keepdims=True)
    e = jnp.exp(logits - m)
    denom = jnp.sum(e, axis=1, keepdims=True)
    out_ref[...] = e * pl.reciprocal(denom, approx=True)


def init_params(key):
    ks = jax.random.split(key, 4)
    emb = jax.random.normal(ks[0], (3, 3), jnp.float32)  # Embedding(3, 3)

    def linear(k, fan_in, fan_out):
        k1, k2 = jax.random.split(k)
        bound = 1.0 / (fan_in ** 0.5)
        w = jax.random.uniform(k1, (fan_in, fan_out), jnp.float32, -bound, bound)
        b = jax.random.uniform(k2, (1, fan_out), jnp.float32, -bound, bound)
        return w, b

    w1, b1 = linear(ks[1], 30, 100)
    w2, b2 = linear(ks[2], 100, 100)
    w3, b3 = linear(ks[3], 100, 9)
    return dict(emb=emb, w1=w1, b1=b1, w2=w2, b2=b2, w3=w3, b3=b3)


def prep_weights(params):
    """Fold relu(embedding) into layer1, zero-pad to lane-exact shapes, cast
    matmul weights to bf16 (biases stay f32; they add to f32 accumulators)."""
    emb, w1, b1 = params["emb"], params["w1"], params["b1"]
    w2, b2 = params["w2"], params["b2"]
    w3, b3 = params["w3"], params["b3"]

    memb = jnp.kron(jnp.eye(10, dtype=jnp.float32), jax.nn.relu(emb))  # (30, 30)
    w1f = memb @ w1                                                    # (30, 100)

    w1p = jnp.zeros((IN_PAD, HID), jnp.float32).at[:30, :100].set(w1f)
    w2p = jnp.zeros((HID, HID), jnp.float32).at[:100, :100].set(w2)
    w3p = jnp.zeros((HID, OUT_PAD), jnp.float32).at[:100, :NUM_OUT].set(w3)
    b1p = jnp.zeros((1, HID), jnp.float32).at[:, :100].set(b1)
    b2p = jnp.zeros((1, HID), jnp.float32).at[:, :100].set(b2)
    b3p = jnp.zeros((1, OUT_PAD), jnp.float32).at[:, :NUM_OUT].set(b3)
    return (w1p.astype(jnp.bfloat16), b1p,
            w2p.astype(jnp.bfloat16), b2p,
            w3p.astype(jnp.bfloat16), b3p)


def qmodel_forward(states2d, turns, params, *, max_block=512):
    B = states2d.shape[0]
    w1p, b1p, w2p, b2p, w3p, b3p = prep_weights(params)

    # glue: token indices (B, 10), repeated x3 into the 30 one-hot slots,
    # padded to 32 lanes and to a multiple of the batch tile, sent as int8
    # (32 B/row of HBM traffic vs 120 B/row for a f32 one-hot).
    idx = jnp.concatenate([states2d.reshape(B, 9), turns[:, None]],
                          axis=1).astype(jnp.int32)        # (B, 10)
    idx = jnp.repeat(idx, 3, axis=1)                        # (B, 30)

    tb = min(max_block, _round_up(B, 32))
    b_pad = _round_up(B, tb)
    idx = jnp.pad(idx, ((0, b_pad - B), (0, IN_PAD - 30)),
                  constant_values=-1).astype(jnp.int8)      # (b_pad, 32)

    out = pl.pallas_call(
        qmodel_kernel,
        out_shape=jax.ShapeDtypeStruct((b_pad, OUT_PAD), jnp.float32),
        grid=(b_pad // tb,),
        in_specs=[
            pl.BlockSpec((tb, IN_PAD), lambda i: (i, 0)),      # streamed indices
            pl.BlockSpec(w1p.shape, lambda i: (0, 0)),         # VMEM-resident weights
            pl.BlockSpec(b1p.shape, lambda i: (0, 0)),
            pl.BlockSpec(w2p.shape, lambda i: (0, 0)),
            pl.BlockSpec(b2p.shape, lambda i: (0, 0)),
            pl.BlockSpec(w3p.shape, lambda i: (0, 0)),
            pl.BlockSpec(b3p.shape, lambda i: (0, 0)),
        ],
        out_specs=pl.BlockSpec((tb, OUT_PAD), lambda i: (i, 0)),
        compiler_params=pltpu.CompilerParams(
            dimension_semantics=("parallel",)),
    )(idx, w1p, b1p, w2p, b2p, w3p, b3p)
    return out[:B, :NUM_OUT]


def qmodel_reference_f32(states2d, turns, params):
    # pure-JAX f32 reference mirroring the PyTorch forward exactly
    B = states2d.shape[0]
    idx = jnp.concatenate([states2d.reshape(B, 9), turns[:, None]],
                          axis=1).astype(jnp.int32)
    x = jax.nn.relu(params["emb"][idx]).reshape(B, 30)
    x = jax.nn.relu(x @ params["w1"] + params["b1"])
    x = jax.nn.relu(x @ params["w2"] + params["b2"])
    x = x @ params["w3"] + params["b3"]
    return jax.nn.softmax(x, axis=1)


def qmodel_reference_bf16(states2d, turns, params):
    # mirrors the kernel's folded / padded / bf16 arithmetic (tight check)
    B = states2d.shape[0]
    w1p, b1p, w2p, b2p, w3p, b3p = prep_weights(params)
    idx = jnp.concatenate([states2d.reshape(B, 9), turns[:, None]],
                          axis=1).astype(jnp.int32)
    g = jax.nn.one_hot(idx, 3, dtype=jnp.float32).reshape(B, 30)
    g = jnp.pad(g, ((0, 0), (0, IN_PAD - 30))).astype(jnp.bfloat16)
    h = jnp.maximum(jnp.dot(g, w1p, preferred_element_type=jnp.float32) + b1p, 0.0)
    h = jnp.maximum(jnp.dot(h.astype(jnp.bfloat16), w2p,
                            preferred_element_type=jnp.float32) + b2p, 0.0)
    logits = jnp.dot(h.astype(jnp.bfloat16), w3p,
                     preferred_element_type=jnp.float32) + b3p
    return jax.nn.softmax(logits[:, :NUM_OUT], axis=1)


if __name__ == "__main__":
    key = jax.random.PRNGKey(0)
    k_params, k_states, k_turns = jax.random.split(key, 3)

    B = 2
    params = init_params(k_params)
    # board cells take values in {0, 1, 2}; turn token in {1, 2}
    states2d = jax.random.randint(k_states, (B, 3, 3), 0, 3, dtype=jnp.int32)
    turns = jax.random.randint(k_turns, (B,), 1, 3, dtype=jnp.int32)

    out = qmodel_forward(states2d, turns, params)
    out = jax.block_until_ready(out)
    assert out.shape == (B, NUM_OUT)

    ref_bf16 = qmodel_reference_bf16(states2d, turns, params)
    ref_f32 = qmodel_reference_f32(states2d, turns, params)
    # tight check vs a reference doing the same bf16/padded math
    assert jnp.allclose(out, ref_bf16, atol=1e-2, rtol=1e-2), (out, ref_bf16)
    # loose check vs the exact f32 PyTorch-equivalent forward (bf16 weights
    # introduce ~1e-3-level differences in the probabilities)
    assert jnp.allclose(out, ref_f32, atol=3e-2), (out, ref_f32)

    print("KERNEL_OK")
</pallas_src>

<mosaic_0001>
module attributes {stable_mosaic.version = 11 : i64} {
  func.func @qmodel_kernel(%arg0: i32, %arg1: memref<32x32xi8, #tpu.memory_space<vmem>>, %arg2: memref<32x128xbf16, #tpu.memory_space<vmem>>, %arg3: memref<1x128xf32, #tpu.memory_space<vmem>>, %arg4: memref<128x128xbf16, #tpu.memory_space<vmem>>, %arg5: memref<1x128xf32, #tpu.memory_space<vmem>>, %arg6: memref<128x128xbf16, #tpu.memory_space<vmem>>, %arg7: memref<1x128xf32, #tpu.memory_space<vmem>>, %arg8: memref<32x128xf32, #tpu.memory_space<vmem>>) attributes {dimension_semantics = [#tpu.dimension_semantics<parallel>], iteration_bounds = array<i64: 1>, scalar_prefetch = 0 : i64, scratch_operands = 0 : i64, tpu.core_type = #tpu.core_type<tc>, window_params = [{transform_indices = @transform_0, window_bounds = array<i64: 32, 32>}, {pipeline_mode = #tpu.pipeline_mode<synchronous>, transform_indices = @transform_1, window_bounds = array<i64: 32, 128>}, {pipeline_mode = #tpu.pipeline_mode<synchronous>, transform_indices = @transform_2, window_bounds = array<i64: 1, 128>}, {pipeline_mode = #tpu.pipeline_mode<synchronous>, transform_indices = @transform_3, window_bounds = array<i64: 128, 128>}, {pipeline_mode = #tpu.pipeline_mode<synchronous>, transform_indices = @transform_4, window_bounds = array<i64: 1, 128>}, {pipeline_mode = #tpu.pipeline_mode<synchronous>, transform_indices = @transform_5, window_bounds = array<i64: 128, 128>}, {pipeline_mode = #tpu.pipeline_mode<synchronous>, transform_indices = @transform_6, window_bounds = array<i64: 1, 128>}, {transform_indices = @transform_7, window_bounds = array<i64: 32, 128>}]} {
    %c0 = arith.constant 0 : index
    %c0_0 = arith.constant 0 : index
    %0 = vector.load %arg1[%c0, %c0_0] : memref<32x32xi8, #tpu.memory_space<vmem>>, vector<32x32xi8>
    %1 = arith.extsi %0 : vector<32x32xi8> to vector<32x32xi32>
    %2 = tpu.iota {dimensions = array<i32: 1>} : vector<32x32xi32>
    %c3_i32 = arith.constant 3 : i32
    %c0_i32 = arith.constant 0 : i32
    %3 = arith.cmpi eq, %c3_i32, %c0_i32 : i32
    %c1_i32 = arith.constant 1 : i32
    %4 = arith.select %3, %c1_i32, %c3_i32 : i32
    %5 = vector.broadcast %4 : i32 to vector<32x32xi32>
    %6 = arith.remsi %2, %5 : vector<32x32xi32>
    %c0_i32_1 = arith.constant 0 : i32
    %7 = vector.broadcast %c0_i32_1 : i32 to vector<32x32xi32>
    %8 = arith.cmpi ne, %6, %7 : vector<32x32xi32>
    %c0_i32_2 = arith.constant 0 : i32
    %9 = vector.broadcast %c0_i32_2 : i32 to vector<32x32xi32>
    %10 = arith.cmpi slt, %6, %9 : vector<32x32xi32>
    %c0_i32_3 = arith.constant 0 : i32
    %11 = arith.cmpi slt, %4, %c0_i32_3 : i32
    %12 = vector.broadcast %11 : i1 to vector<32x32xi1>
    %13 = vector.broadcast %12 : vector<32x32xi1> to vector<32x32xi1>
    %14 = arith.xori %10, %13 : vector<32x32xi1>
    %15 = arith.andi %14, %8 : vector<32x32xi1>
    %16 = vector.broadcast %4 : i32 to vector<32x32xi32>
    %17 = arith.addi %6, %16 : vector<32x32xi32>
    %18 = arith.select %15, %17, %6 : vector<32x32xi1>, vector<32x32xi32>
    %19 = arith.cmpi eq, %1, %18 : vector<32x32xi32>
    %cst = arith.constant 1.000000e+00 : f32
    %cst_4 = arith.constant 0.000000e+00 : f32
    %20 = vector.broadcast %cst : f32 to vector<32x32xf32>
    %21 = vector.broadcast %cst_4 : f32 to vector<32x32xf32>
    %22 = arith.select %19, %20, %21 : vector<32x32xi1>, vector<32x32xf32>
    %23 = arith.truncf %22 : vector<32x32xf32> to vector<32x32xbf16>
    %c0_5 = arith.constant 0 : index
    %c0_6 = arith.constant 0 : index
    %24 = vector.load %arg2[%c0_5, %c0_6] : memref<32x128xbf16, #tpu.memory_space<vmem>>, vector<32x128xbf16>
    %cst_7 = arith.constant dense<0.000000e+00> : vector<32x128xf32>
    %25 = tpu.matmul %23, %24, %cst_7 {dimension_numbers = #tpu.dot_dimension_numbers<[1], [0], [0], [1], [0, 0, 1, 1], [], []>} : vector<32x32xbf16>, vector<32x128xbf16>, vector<32x128xf32> -> vector<32x128xf32>
    %c0_8 = arith.constant 0 : index
    %c0_9 = arith.constant 0 : index
    %26 = vector.load %arg3[%c0_8, %c0_9] : memref<1x128xf32, #tpu.memory_space<vmem>>, vector<1x128xf32>
    %27 = vector.broadcast %26 : vector<1x128xf32> to vector<32x128xf32>
    %28 = arith.addf %25, %27 : vector<32x128xf32>
    %cst_10 = arith.constant 0.000000e+00 : f32
    %29 = vector.broadcast %cst_10 : f32 to vector<32x128xf32>
    %30 = arith.maximumf %28, %29 : vector<32x128xf32>
    %31 = arith.truncf %30 : vector<32x128xf32> to vector<32x128xbf16>
    %c0_11 = arith.constant 0 : index
    %c0_12 = arith.constant 0 : index
    %32 = vector.load %arg4[%c0_11, %c0_12] : memref<128x128xbf16, #tpu.memory_space<vmem>>, vector<128x128xbf16>
    %cst_13 = arith.constant dense<0.000000e+00> : vector<32x128xf32>
    %33 = tpu.matmul %31, %32, %cst_13 {dimension_numbers = #tpu.dot_dimension_numbers<[1], [0], [0], [1], [0, 0, 1, 1], [], []>} : vector<32x128xbf16>, vector<128x128xbf16>, vector<32x128xf32> -> vector<32x128xf32>
    %c0_14 = arith.constant 0 : index
    %c0_15 = arith.constant 0 : index
    %34 = vector.load %arg5[%c0_14, %c0_15] : memref<1x128xf32, #tpu.memory_space<vmem>>, vector<1x128xf32>
    %35 = vector.broadcast %34 : vector<1x128xf32> to vector<32x128xf32>
    %36 = arith.addf %33, %35 : vector<32x128xf32>
    %cst_16 = arith.constant 0.000000e+00 : f32
    %37 = vector.broadcast %cst_16 : f32 to vector<32x128xf32>
    %38 = arith.maximumf %36, %37 : vector<32x128xf32>
    %39 = arith.truncf %38 : vector<32x128xf32> to vector<32x128xbf16>
    %c0_17 = arith.constant 0 : index
    %c0_18 = arith.constant 0 : index
    %40 = vector.load %arg6[%c0_17, %c0_18] : memref<128x128xbf16, #tpu.memory_space<vmem>>, vector<128x128xbf16>
    %cst_19 = arith.constant dense<0.000000e+00> : vector<32x128xf32>
    %41 = tpu.matmul %39, %40, %cst_19 {dimension_numbers = #tpu.dot_dimension_numbers<[1], [0], [0], [1], [0, 0, 1, 1], [], []>} : vector<32x128xbf16>, vector<128x128xbf16>, vector<32x128xf32> -> vector<32x128xf32>
    %c0_20 = arith.constant 0 : index
    %c0_21 = arith.constant 0 : index
    %42 = vector.load %arg7[%c0_20, %c0_21] : memref<1x128xf32, #tpu.memory_space<vmem>>, vector<1x128xf32>
    %43 = vector.broadcast %42 : vector<1x128xf32> to vector<32x128xf32>
    %44 = arith.addf %41, %43 : vector<32x128xf32>
    %45 = tpu.iota {dimensions = array<i32: 1>} : vector<32x128xi32>
    %c9_i32 = arith.constant 9 : i32
    %46 = vector.broadcast %c9_i32 : i32 to vector<32x128xi32>
    %47 = arith.cmpi slt, %45, %46 : vector<32x128xi32>
    %cst_22 = arith.constant -1.000000e+30 : f32
    %48 = vector.broadcast %cst_22 : f32 to vector<32x128xf32>
    %49 = arith.select %47, %44, %48 : vector<32x128xi1>, vector<32x128xf32>
    %cst_23 = arith.constant dense<0xFF800000> : vector<32xf32>
    %50 = vector.multi_reduction <maximumf>, %49, %cst_23 [1] : vector<32x128xf32> to vector<32xf32>
    %51 = vector.shape_cast %50 : vector<32xf32> to vector<32x1xf32>
    %52 = vector.broadcast %51 : vector<32x1xf32> to vector<32x128xf32>
    %53 = arith.subf %49, %52 : vector<32x128xf32>
    %54 = math.exp %53 : vector<32x128xf32>
    %cst_24 = arith.constant dense<0.000000e+00> : vector<32xf32>
    %55 = vector.multi_reduction <add>, %54, %cst_24 [1] : vector<32x128xf32> to vector<32xf32>
    %56 = vector.shape_cast %55 : vector<32xf32> to vector<32x1xf32>
    %57 = tpu.reciprocal %56 {approx = true} : vector<32x1xf32> -> vector<32x1xf32>
    %58 = vector.broadcast %57 : vector<32x1xf32> to vector<32x128xf32>
    %59 = arith.mulf %54, %58 : vector<32x128xf32>
    %c0_25 = arith.constant 0 : index
    %c0_26 = arith.constant 0 : index
    %60 = vector.load %arg8[%c0_25, %c0_26] : memref<32x128xf32, #tpu.memory_space<vmem>>, vector<32x128xf32>
    tpu.vector_store %arg8[%c0_25, %c0_26], %59 {strides = array<i32>} : memref<32x128xf32, #tpu.memory_space<vmem>>, vector<32x128xf32>,
    return
  }
  func.func @transform_0(%arg0: i32) -> (i32, i32) {
    %c0_i32 = arith.constant 0 : i32
    %c0_i32_0 = arith.constant 0 : i32
    return %arg0, %c0_i32 : i32, i32
  }
  func.func @transform_1(%arg0: i32) -> (i32, i32) {
    %c0_i32 = arith.constant 0 : i32
    %c0_i32_0 = arith.constant 0 : i32
    %c0_i32_1 = arith.constant 0 : i32
    return %c0_i32, %c0_i32_0 : i32, i32
  }
  func.func @transform_2(%arg0: i32) -> (i32, i32) {
    %c0_i32 = arith.constant 0 : i32
    %c0_i32_0 = arith.constant 0 : i32
    %c0_i32_1 = arith.constant 0 : i32
    return %c0_i32, %c0_i32_0 : i32, i32
  }
  func.func @transform_3(%arg0: i32) -> (i32, i32) {
    %c0_i32 = arith.constant 0 : i32
    %c0_i32_0 = arith.constant 0 : i32
    %c0_i32_1 = arith.constant 0 : i32
    return %c0_i32, %c0_i32_0 : i32, i32
  }
  func.func @transform_4(%arg0: i32) -> (i32, i32) {
    %c0_i32 = arith.constant 0 : i32
    %c0_i32_0 = arith.constant 0 : i32
    %c0_i32_1 = arith.constant 0 : i32
    return %c0_i32, %c0_i32_0 : i32, i32
  }
  func.func @transform_5(%arg0: i32) -> (i32, i32) {
    %c0_i32 = arith.constant 0 : i32
    %c0_i32_0 = arith.constant 0 : i32
    %c0_i32_1 = arith.constant 0 : i32
    return %c0_i32, %c0_i32_0 : i32, i32
  }
  func.func @transform_6(%arg0: i32) -> (i32, i32) {
    %c0_i32 = arith.constant 0 : i32
    %c0_i32_0 = arith.constant 0 : i32
    %c0_i32_1 = arith.constant 0 : i32
    return %c0_i32, %c0_i32_0 : i32, i32
  }
  func.func @transform_7(%arg0: i32) -> (i32, i32) {
    %c0_i32 = arith.constant 0 : i32
    %c0_i32_0 = arith.constant 0 : i32
    return %arg0, %c0_i32 : i32, i32
  }
}

</mosaic_0001>

<llo_original>
// kernel: tpu_custom_call.1
$region0: #{tpu_custom_call.1}
  #allocation0 [shape = 'u32[]', space=smem, size = 0x4, offset = 0x4, fixed_abs, tag = 'smem constant byte address 0x4 - core index']
  #allocation1 [shape = 'u32[144,128]{1,0:T(1,128)}', space=vmem, size = 0x12000, scoped, tag = 'internal scratch']
  %s0 = inlined_call_operand.hbm [shape: s8[32,32], index: 0, kind: input, shape index: {}]
  %s1 = inlined_call_operand.hbm [shape: bf16[32,128], index: 1, kind: input, shape index: {}]
  %s2 = inlined_call_operand.vmem [shape: f32[1,128], index: 2, kind: input, shape index: {}]
  %s3 = inlined_call_operand.hbm [shape: bf16[128,128], index: 3, kind: input, shape index: {}]
  %s4 = inlined_call_operand.vmem [shape: f32[1,128], index: 4, kind: input, shape index: {}]
  %s5 = inlined_call_operand.hbm [shape: bf16[128,128], index: 5, kind: input, shape index: {}]
  %s6 = inlined_call_operand.vmem [shape: f32[1,128], index: 6, kind: input, shape index: {}]
  %s7 = inlined_call_operand.hbm [shape: f32[32,128], index: 7, kind: output, shape index: {}]
  %s8 = sld [smem:[#allocation0]]
  $region54: #{tpu_custom_call.1} parent=0
    _
  %s10 = ssub.s32 1, %s8
  %s11 = scalar_select 0, %s10, %s8
  $region1: #{tpu_custom_call.1} parent=0
    #allocation2 [shape = 'u8[4096]{0}', space=vmem, size = 0x1000, scoped, tag = 'input window, operand 0, single buffered']
    #allocation3 [shape = 's32[1]{0}', space=sflag, size = 0x4, scoped, tag = 'scoped memory for tpu_custom_call.1']
    #allocation4 [shape = 's32[1]{0}', space=sflag, size = 0x4, scoped, tag = 'scoped memory for tpu_custom_call.1']
    #allocation5 [shape = 'u8[8192]{0}', space=vmem, size = 0x2000, scoped, tag = 'input window, operand 1, single buffered']
    #allocation6 [shape = 's32[1]{0}', space=sflag, size = 0x4, scoped, tag = 'scoped memory for tpu_custom_call.1']
    #allocation7 [shape = 'u8[32768]{0}', space=vmem, size = 0x8000, scoped, tag = 'input window, operand 3, single buffered']
    #allocation8 [shape = 'u8[32768]{0}', space=vmem, size = 0x8000, scoped, tag = 'input window, operand 5, single buffered']
    #allocation9 [shape = 's32[1]{0}', space=sflag, size = 0x4, scoped, tag = 'scoped memory for tpu_custom_call.1']
    #allocation10 [shape = 'u8[16384]{0}', space=vmem, size = 0x4000, scoped, tag = 'output window, operand 0, single buffered']
    %12 = vsyncpa [#allocation3], 0
    %13 = vsyncpa [#allocation6], 0
    %14 = vsyncpa [#allocation9], 0
    %15 = vsyncpa [#allocation4], 0
    // Predicated region
    $region2: #{tpu_custom_call.1} parent=1 // pred_check
      _
    $region3: #{tpu_custom_call.1} parent=1 // pred_check_branch
      %17 = sbr.rel (0) target = $region5
    $region4: #{tpu_custom_call.1} parent=1 // pred_region
      %s19 = ssub.s32 128, 128
      %20 = vsyncadd [#allocation3], %s19
      %s22 = sshll.u32 [#allocation2], 4
      %s23 = int_to_ptr.vmem [resolvable:$true] %s22
      %25 = dma.hbm_to_vmem [thread:$0]  %s0, 128, %s23, [#allocation3]
    $region5: #{tpu_custom_call.1} parent=1 // pred_fallthru
      _
    // Predicated region
    $region6: #{tpu_custom_call.1} parent=1 // pred_check
      _
    $region7: #{tpu_custom_call.1} parent=1 // pred_check_branch
      %27 = sbr.rel (0) target = $region9
    $region8: #{tpu_custom_call.1} parent=1 // pred_region
      %s29 = ssub.s32 256, 256
      %30 = vsyncadd [#allocation6], %s29
      %s31 = sshll.u32 [#allocation5], 4
      %s32 = int_to_ptr.vmem [resolvable:$true] %s31
      %37 = dma.hbm_to_vmem [thread:$0]  %s1, 256, %s32, [#allocation6], 64, 64, 4
    $region9: #{tpu_custom_call.1} parent=1 // pred_fallthru
      _
    // Predicated region
    $region10: #{tpu_custom_call.1} parent=1 // pred_check
      _
    $region11: #{tpu_custom_call.1} parent=1 // pred_check_branch
      %39 = sbr.rel (0) target = $region13
    $region12: #{tpu_custom_call.1} parent=1 // pred_region
      _
    $region13: #{tpu_custom_call.1} parent=1 // pred_fallthru
      _
    // Predicated region
    $region14: #{tpu_custom_call.1} parent=1 // pred_check
      _
    $region15: #{tpu_custom_call.1} parent=1 // pred_check_branch
      %41 = sbr.rel (0) target = $region17
    $region16: #{tpu_custom_call.1} parent=1 // pred_region
      %s43 = ssub.s32 1024, 1024
      %44 = vsyncadd [#allocation6], %s43
      %s45 = sshll.u32 [#allocation7], 4
      %s46 = int_to_ptr.vmem [resolvable:$true] %s45
      %51 = dma.hbm_to_vmem [thread:$0]  %s3, 1024, %s46, [#allocation6], 64, 64, 4
    $region17: #{tpu_custom_call.1} parent=1 // pred_fallthru
      _
    // Predicated region
    $region18: #{tpu_custom_call.1} parent=1 // pred_check
      _
    $region19: #{tpu_custom_call.1} parent=1 // pred_check_branch
      %53 = sbr.rel (0) target = $region21
    $region20: #{tpu_custom_call.1} parent=1 // pred_region
      _
    $region21: #{tpu_custom_call.1} parent=1 // pred_fallthru
      _
    // Predicated region
    $region22: #{tpu_custom_call.1} parent=1 // pred_check
      _
    $region23: #{tpu_custom_call.1} parent=1 // pred_check_branch
      %55 = sbr.rel (0) target = $region25
    $region24: #{tpu_custom_call.1} parent=1 // pred_region
      %s57 = ssub.s32 1024, 1024
      %58 = vsyncadd [#allocation9], %s57
      %s59 = sshll.u32 [#allocation8], 4
      %s60 = int_to_ptr.vmem [resolvable:$true] %s59
      %65 = dma.hbm_to_vmem [thread:$0]  %s5, 1024, %s60, [#allocation9], 64, 64, 4
    $region25: #{tpu_custom_call.1} parent=1 // pred_fallthru
      _
    // Predicated region
    $region26: #{tpu_custom_call.1} parent=1 // pred_check
      _
    $region27: #{tpu_custom_call.1} parent=1 // pred_check_branch
      %67 = sbr.rel (0) target = $region29
    $region28: #{tpu_custom_call.1} parent=1 // pred_region
      _
    $region29: #{tpu_custom_call.1} parent=1 // pred_fallthru
      _
    // Predicated region
    $region30: #{tpu_custom_call.1} parent=1 // pred_check
      _
    $region31: #{tpu_custom_call.1} parent=1 // pred_check_branch
      %69 = sbr.rel (0) target = $region33
    $region32: #{tpu_custom_call.1} parent=1 // pred_region
      %70 = dma.done [#allocation3], 128
    $region33: #{tpu_custom_call.1} parent=1 // pred_fallthru
      _
    // Predicated region
    $region34: #{tpu_custom_call.1} parent=1 // pred_check
      _
    $region35: #{tpu_custom_call.1} parent=1 // pred_check_branch
      %72 = sbr.rel (0) target = $region37
    $region36: #{tpu_custom_call.1} parent=1 // pred_region
      %73 = dma.done [#allocation6], 256
    $region37: #{tpu_custom_call.1} parent=1 // pred_fallthru
      _
    // Predicated region
    $region38: #{tpu_custom_call.1} parent=1 // pred_check
      _
    $region39: #{tpu_custom_call.1} parent=1 // pred_check_branch
      %75 = sbr.rel (0) target = $region41
    $region40: #{tpu_custom_call.1} parent=1 // pred_region
      %76 = dma.done [#allocation6], 1024
    $region41: #{tpu_custom_call.1} parent=1 // pred_fallthru
      _
    // Predicated region
    $region42: #{tpu_custom_call.1} parent=1 // pred_check
      _
    $region43: #{tpu_custom_call.1} parent=1 // pred_check_branch
      %78 = sbr.rel (0) target = $region45
    $region44: #{tpu_custom_call.1} parent=1 // pred_region
      %79 = dma.done [#allocation9], 1024
    $region45: #{tpu_custom_call.1} parent=1 // pred_fallthru
      _
    %v81 = vld [vmem:[#allocation2] sm:$0xff]
    %v82 = vunpack.c.0.s8 %v81
    %v83 = vunpack.c.1.s8 %v81
    %v84 = vunpack.c.2.s8 %v81
    %v85 = vunpack.c.3.s8 %v81
    %v86 = vlaneseq
    %v87 = vand.u32 %v86, 127
    %vm88 = vcmp.lt.s32.totalorder %v87, 0
    %v89 = vsub.s32 0, %v87
    %v90 = vsel %vm88, %v89, %v87
    %v91 = vmul.u32.u64.compose %v90, 2863311531
    %v92 = vextract.low.u32 %v91
    %v93 = vextract.high.u32 %v91
    %v94 = vshrl.u32 %v93, 1
    %v95 = vmul.u32 %v94, 3
    %v96 = vsub.s32 %v90, %v95
    %v97 = vsub.s32 0, %v96
    %v98 = vsel %vm88, %v97, %v96
    %vm99 = vcmp.ne.s32.totalorder %v98, 0
    %vm100 = vcmp.lt.s32.totalorder %v98, 0
    %vm101 = vmand %vm100, %vm99
    %v102 = vadd.s32 %v98, 3
    %v103 = vsel %vm101, %v102, %v98
    %vm104 = vcmp.eq.s32.totalorder %v82, %v103
    %vm105 = vcmp.eq.s32.totalorder %v83, %v103
    %vm106 = vcmp.eq.s32.totalorder %v84, %v103
    %vm107 = vcmp.eq.s32.totalorder %v85, %v103
    %v108 = vsel %vm104, 1.0, 0.0
    %v109 = vsel %vm105, 1.0, 0.0
    %v110 = vsel %vm106, 1.0, 0.0
    %v111 = vsel %vm107, 1.0, 0.0
    %v112 = vpack.c.bf16 %v109, %v108
    %v113 = vpack.c.bf16 %v111, %v110
    %v114 = vld [vmem:[#allocation5] sm:$0xf]
    %v115 = vld [vmem:[#allocation5 + $0x4] sm:$0xf]
    %v116 = vld [vmem:[#allocation5 + $0x8] sm:$0xf]
    %v117 = vld [vmem:[#allocation5 + $0xc] sm:$0xf]
    %v118 = vld [vmem:[%s2] sm:$0x1]
    %v120 = vlaneseq
    %v121 = vshrl.u32 %v120, 7
    %v122 = vsub.s32 0, %v121
    %v123 = vrot.slane %v118, %v122
    %v129 = vunpack.c.l.b16 %v114
    %v130 = vunpack.c.l.b16 %v115
    %v131 = vunpack.c.l.b16 %v116
    %v132 = vunpack.c.l.b16 %v117
    %v133 = vpack.c.b16 %v130, %v129
    %v134 = vpack.c.b16 %v132, %v131
    %vm137 = vcmask 261120
    %v139 = vsel %vm137, %v112, 0
    %v142 = vsel %vm137, %v113, 0
    %144 = vmatprep.subr.bf16.mxu0 0
    %145 = vmatpush1.bf16.msra.mxu0 %v133
    %146 = vmatprep.subr.bf16.mxu0 0
    %147 = vmatpush1.bf16.msra.mxu0 %v134
    %148 = vmatprep.subr.bf16.mxu0 0
    %149 = vmatpush1.bf16.msra.mxu0 0
    %150 = vmatprep.subr.bf16.mxu0 0
    %151 = vmatpush1.bf16.msra.mxu0 0
    %152 = vmatprep.subr.bf16.mxu0 0
    %153 = vmatpush1.bf16.msra.mxu0 0
    %154 = vmatprep.subr.bf16.mxu0 0
    %155 = vmatpush1.bf16.msra.mxu0 0
    %156 = vmatprep.subr.bf16.mxu0 0
    %157 = vmatpush1.bf16.msra.mxu0 0
    %158 = vmatprep.subr.bf16.mxu0 0
    %159 = vmatpush1.bf16.msra.mxu0 0
    %160 = vmatprep.subr.bf16.mxu0 0
    %161 = vmatpush1.bf16.msra.mxu0 0
    %162 = vmatprep.subr.bf16.mxu0 0
    %163 = vmatpush1.bf16.msra.mxu0 0
    %164 = vmatprep.subr.bf16.mxu0 0
    %165 = vmatpush1.bf16.msra.mxu0 0
    %166 = vmatprep.subr.bf16.mxu0 0
    %167 = vmatpush1.bf16.msra.mxu0 0
    %168 = vmatprep.subr.bf16.mxu0 0
    %169 = vmatpush1.bf16.msra.mxu0 0
    %170 = vmatprep.subr.bf16.mxu0 0
    %171 = vmatpush1.bf16.msra.mxu0 0
    %172 = vmatprep.subr.bf16.mxu0 0
    %173 = vmatpush1.bf16.msra.mxu0 0
    %174 = vmatprep.subr.bf16.mxu0 0
    %175 = vmatpush1.bf16.msra.mxu0 0
    %176 = vmatprep.mubr.bf16.mxu0 0
    %177 = vmatmul.mubr.bf16.gmra.mrb[0].mxu0 %v139
    %v178 = vpop.f32.mrb[0].mxu0
    %v179 = vadd.f32 %v123, %v178
    %v180 = vpop.f32.mrb[0].mxu0
    %v181 = vpop.f32.mrb[0].mxu0
    %v182 = vadd.f32 %v123, %v181
    %v183 = vpop.f32.mrb[0].mxu0
    %184 = vmatprep.mubr.bf16.mxu0 0
    %185 = vmatmul.mubr.bf16.gmra.mrb[0].mxu0 %v142
    %v186 = vpop.f32.mrb[0].mxu0
    %v187 = vadd.f32 %v123, %v186
    %v188 = vpop.f32.mrb[0].mxu0
    %v189 = vpop.f32.mrb[0].mxu0
    %v190 = vadd.f32 %v123, %v189
    %v191 = vpop.f32.mrb[0].mxu0
    %192 = vdwg.mxu0
    %v193 = vmax.f32 %v179, 0.0
    %v194 = vmax.f32 %v182, 0.0
    %v195 = vmax.f32 %v187, 0.0
    %v196 = vmax.f32 %v190, 0.0
    %v197 = vpack.c.bf16 %v194, %v193
    %v198 = vpack.c.bf16 %v196, %v195
    %v199 = vld [vmem:[#allocation7] sm:$0xf]
    %v200 = vld [vmem:[#allocation7 + $0x4] sm:$0xf]
    %v201 = vld [vmem:[#allocation7 + $0x8] sm:$0xf]
    %v202 = vld [vmem:[#allocation7 + $0xc] sm:$0xf]
    %v203 = vld [vmem:[#allocation7 + $0x10] sm:$0xf]
    %v204 = vld [vmem:[#allocation7 + $0x14] sm:$0xf]
    %v205 = vld [vmem:[#allocation7 + $0x18] sm:$0xf]
    %v206 = vld [vmem:[#allocation7 + $0x1c] sm:$0xf]
    %v207 = vld [vmem:[#allocation7 + $0x20] sm:$0xf]
    %v208 = vld [vmem:[#allocation7 + $0x24] sm:$0xf]
    %v209 = vld [vmem:[#allocation7 + $0x28] sm:$0xf]
    %v210 = vld [vmem:[#allocation7 + $0x2c] sm:$0xf]
    %v211 = vld [vmem:[#allocation7 + $0x30] sm:$0xf]
    %v212 = vld [vmem:[#allocation7 + $0x34] sm:$0xf]
    %v213 = vld [vmem:[#allocation7 + $0x38] sm:$0xf]
    %v214 = vld [vmem:[#allocation7 + $0x3c] sm:$0xf]
    %v215 = vld [vmem:[%s4] sm:$0x1]
    %v217 = vlaneseq
    %v218 = vshrl.u32 %v217, 7
    %v219 = vsub.s32 0, %v218
    %v220 = vrot.slane %v215, %v219
    %v238 = vunpack.c.l.b16 %v199
    %v239 = vunpack.c.l.b16 %v200
    %v240 = vunpack.c.l.b16 %v201
    %v241 = vunpack.c.l.b16 %v202
    %v242 = vunpack.c.l.b16 %v203
    %v243 = vunpack.c.l.b16 %v204
    %v244 = vunpack.c.l.b16 %v205
    %v245 = vunpack.c.l.b16 %v206
    %v246 = vunpack.c.l.b16 %v207
    %v247 = vunpack.c.l.b16 %v208
    %v248 = vunpack.c.l.b16 %v209
    %v249 = vunpack.c.l.b16 %v210
    %v250 = vunpack.c.l.b16 %v211
    %v251 = vunpack.c.l.b16 %v212
    %v252 = vunpack.c.l.b16 %v213
    %v253 = vunpack.c.l.b16 %v214
    %v254 = vpack.c.b16 %v239, %v238
    %v255 = vpack.c.b16 %v241, %v240
    %v256 = vpack.c.b16 %v243, %v242
    %v257 = vpack.c.b16 %v245, %v244
    %v258 = vpack.c.b16 %v247, %v246
    %v259 = vpack.c.b16 %v249, %v248
    %v260 = vpack.c.b16 %v251, %v250
    %v261 = vpack.c.b16 %v253, %v252
    %270 = vmatprep.subr.bf16.mxu0 0
    %271 = vmatpush1.bf16.msra.mxu0 %v254
    %272 = vmatprep.subr.bf16.mxu0 0
    %273 = vmatpush1.bf16.msra.mxu0 %v255
    %274 = vmatprep.subr.bf16.mxu0 0
    %275 = vmatpush1.bf16.msra.mxu0 %v256
    %276 = vmatprep.subr.bf16.mxu0 0
    %277 = vmatpush1.bf16.msra.mxu0 %v257
    %278 = vmatprep.subr.bf16.mxu0 0
    %279 = vmatpush1.bf16.msra.mxu0 %v258
    %280 = vmatprep.subr.bf16.mxu0 0
    %281 = vmatpush1.bf16.msra.mxu0 %v259
    %282 = vmatprep.subr.bf16.mxu0 0
    %283 = vmatpush1.bf16.msra.mxu0 %v260
    %284 = vmatprep.subr.bf16.mxu0 0
    %285 = vmatpush1.bf16.msra.mxu0 %v261
    %286 = vmatprep.subr.bf16.mxu0 0
    %287 = vmatpush1.bf16.msra.mxu0 0
    %288 = vmatprep.subr.bf16.mxu0 0
    %289 = vmatpush1.bf16.msra.mxu0 0
    %290 = vmatprep.subr.bf16.mxu0 0
    %291 = vmatpush1.bf16.msra.mxu0 0
    %292 = vmatprep.subr.bf16.mxu0 0
    %293 = vmatpush1.bf16.msra.mxu0 0
    %294 = vmatprep.subr.bf16.mxu0 0
    %295 = vmatpush1.bf16.msra.mxu0 0
    %296 = vmatprep.subr.bf16.mxu0 0
    %297 = vmatpush1.bf16.msra.mxu0 0
    %298 = vmatprep.subr.bf16.mxu0 0
    %299 = vmatpush1.bf16.msra.mxu0 0
    %300 = vmatprep.subr.bf16.mxu0 0
    %301 = vmatpush1.bf16.msra.mxu0 0
    %302 = vmatprep.mubr.bf16.mxu0 0
    %303 = vmatmul.mubr.bf16.gmra.mrb[0].mxu0 %v197
    %v304 = vpop.f32.mrb[0].mxu0
    %v305 = vadd.f32 %v220, %v304
    %v306 = vpop.f32.mrb[0].mxu0
    %v307 = vpop.f32.mrb[0].mxu0
    %v308 = vadd.f32 %v220, %v307
    %v309 = vpop.f32.mrb[0].mxu0
    %310 = vmatprep.mubr.bf16.mxu0 0
    %311 = vmatmul.mubr.bf16.gmra.mrb[0].mxu0 %v198
    %v312 = vpop.f32.mrb[0].mxu0
    %v313 = vadd.f32 %v220, %v312
    %v314 = vpop.f32.mrb[0].mxu0
    %v315 = vpop.f32.mrb[0].mxu0
    %v316 = vadd.f32 %v220, %v315
    %v317 = vpop.f32.mrb[0].mxu0
    %318 = vdwg.mxu0
    %v319 = vmax.f32 %v305, 0.0
    %v320 = vmax.f32 %v308, 0.0
    %v321 = vmax.f32 %v313, 0.0
    %v322 = vmax.f32 %v316, 0.0
    %v323 = vpack.c.bf16 %v320, %v319
    %v324 = vpack.c.bf16 %v322, %v321
    %v325 = vld [vmem:[#allocation8] sm:$0xf]
    %v326 = vld [vmem:[#allocation8 + $0x4] sm:$0xf]
    %v327 = vld [vmem:[#allocation8 + $0x8] sm:$0xf]
    %v328 = vld [vmem:[#allocation8 + $0xc] sm:$0xf]
    %v329 = vld [vmem:[#allocation8 + $0x10] sm:$0xf]
    %v330 = vld [vmem:[#allocation8 + $0x14] sm:$0xf]
    %v331 = vld [vmem:[#allocation8 + $0x18] sm:$0xf]
    %v332 = vld [vmem:[#allocation8 + $0x1c] sm:$0xf]
    %v333 = vld [vmem:[#allocation8 + $0x20] sm:$0xf]
    %v334 = vld [vmem:[#allocation8 + $0x24] sm:$0xf]
    %v335 = vld [vmem:[#allocation8 + $0x28] sm:$0xf]
    %v336 = vld [vmem:[#allocation8 + $0x2c] sm:$0xf]
    %v337 = vld [vmem:[#allocation8 + $0x30] sm:$0xf]
    %v338 = vld [vmem:[#allocation8 + $0x34] sm:$0xf]
    %v339 = vld [vmem:[#allocation8 + $0x38] sm:$0xf]
    %v340 = vld [vmem:[#allocation8 + $0x3c] sm:$0xf]
    %v341 = vld [vmem:[%s6] sm:$0x1]
    %v343 = vlaneseq
    %v344 = vshrl.u32 %v343, 7
    %v345 = vsub.s32 0, %v344
    %v346 = vrot.slane %v341, %v345
    %v364 = vunpack.c.l.b16 %v325
    %v365 = vunpack.c.l.b16 %v326
    %v366 = vunpack.c.l.b16 %v327
    %v367 = vunpack.c.l.b16 %v328
    %v368 = vunpack.c.l.b16 %v329
    %v369 = vunpack.c.l.b16 %v330
    %v370 = vunpack.c.l.b16 %v331
    %v371 = vunpack.c.l.b16 %v332
    %v372 = vunpack.c.l.b16 %v333
    %v373 = vunpack.c.l.b16 %v334
    %v374 = vunpack.c.l.b16 %v335
    %v375 = vunpack.c.l.b16 %v336
    %v376 = vunpack.c.l.b16 %v337
    %v377 = vunpack.c.l.b16 %v338
    %v378 = vunpack.c.l.b16 %v339
    %v379 = vunpack.c.l.b16 %v340
    %v380 = vpack.c.b16 %v365, %v364
    %v381 = vpack.c.b16 %v367, %v366
    %v382 = vpack.c.b16 %v369, %v368
    %v383 = vpack.c.b16 %v371, %v370
    %v384 = vpack.c.b16 %v373, %v372
    %v385 = vpack.c.b16 %v375, %v374
    %v386 = vpack.c.b16 %v377, %v376
    %v387 = vpack.c.b16 %v379, %v378
    %396 = vmatprep.subr.bf16.mxu0 0
    %397 = vmatpush1.bf16.msra.mxu0 %v380
    %398 = vmatprep.subr.bf16.mxu0 0
    %399 = vmatpush1.bf16.msra.mxu0 %v381
    %400 = vmatprep.subr.bf16.mxu0 0
    %401 = vmatpush1.bf16.msra.mxu0 %v382
    %402 = vmatprep.subr.bf16.mxu0 0
    %403 = vmatpush1.bf16.msra.mxu0 %v383
    %404 = vmatprep.subr.bf16.mxu0 0
    %405 = vmatpush1.bf16.msra.mxu0 %v384
    %406 = vmatprep.subr.bf16.mxu0 0
    %407 = vmatpush1.bf16.msra.mxu0 %v385
    %408 = vmatprep.subr.bf16.mxu0 0
    %409 = vmatpush1.bf16.msra.mxu0 %v386
    %410 = vmatprep.subr.bf16.mxu0 0
    %411 = vmatpush1.bf16.msra.mxu0 %v387
    %412 = vmatprep.subr.bf16.mxu0 0
    %413 = vmatpush1.bf16.msra.mxu0 0
    %414 = vmatprep.subr.bf16.mxu0 0
    %415 = vmatpush1.bf16.msra.mxu0 0
    %416 = vmatprep.subr.bf16.mxu0 0
    %417 = vmatpush1.bf16.msra.mxu0 0
    %418 = vmatprep.subr.bf16.mxu0 0
    %419 = vmatpush1.bf16.msra.mxu0 0
    %420 = vmatprep.subr.bf16.mxu0 0
    %421 = vmatpush1.bf16.msra.mxu0 0
    %422 = vmatprep.subr.bf16.mxu0 0
    %423 = vmatpush1.bf16.msra.mxu0 0
    %424 = vmatprep.subr.bf16.mxu0 0
    %425 = vmatpush1.bf16.msra.mxu0 0
    %426 = vmatprep.subr.bf16.mxu0 0
    %427 = vmatpush1.bf16.msra.mxu0 0
    %428 = vmatprep.mubr.bf16.mxu0 0
    %429 = vmatmul.mubr.bf16.gmra.mrb[0].mxu0 %v323
    %v430 = vpop.f32.mrb[0].mxu0
    %v431 = vadd.f32 %v346, %v430
    %v432 = vpop.f32.mrb[0].mxu0
    %v433 = vpop.f32.mrb[0].mxu0
    %v434 = vadd.f32 %v346, %v433
    %v435 = vpop.f32.mrb[0].mxu0
    %436 = vmatprep.mubr.bf16.mxu0 0
    %437 = vmatmul.mubr.bf16.gmra.mrb[0].mxu0 %v324
    %v438 = vpop.f32.mrb[0].mxu0
    %v439 = vadd.f32 %v346, %v438
    %v440 = vpop.f32.mrb[0].mxu0
    %v441 = vpop.f32.mrb[0].mxu0
    %v442 = vadd.f32 %v346, %v441
    %v443 = vpop.f32.mrb[0].mxu0
    %444 = vdwg.mxu0
    %vm445 = vcmp.lt.s32.totalorder %v87, 9
    %v446 = vsel %vm445, %v431, -1e+30
    %v447 = vsel %vm445, %v434, -1e+30
    %v448 = vsel %vm445, %v439, -1e+30
    %v449 = vsel %vm445, %v442, -1e+30
    %450 = vmax.xlane.f32.xlu0 %v446
    %v451 = vpop.xlane.xlu0 %450
    %452 = vmax.xlane.f32.xlu0 %v447
    %v453 = vpop.xlane.xlu0 %452
    %454 = vmax.xlane.f32.xlu0 %v448
    %v455 = vpop.xlane.xlu0 %454
    %456 = vmax.xlane.f32.xlu0 %v449
    %v457 = vpop.xlane.xlu0 %456
    %v458 = vsub.f32 %v446, %v451
    %v459 = vsub.f32 %v447, %v453
    %v460 = vsub.f32 %v448, %v455
    %v461 = vsub.f32 %v449, %v457
    %v462 = vmul.f32 %v458, 1.442695
    %v463 = vpow.pop %v462
    %v464 = vmul.f32 %v459, 1.442695
    %v465 = vpow.pop %v464
    %v466 = vmul.f32 %v460, 1.442695
    %v467 = vpow.pop %v466
    %v468 = vmul.f32 %v461, 1.442695
    %v469 = vpow.pop %v468
    %470 = vadd.xlane.f32.xlu0 %v463
    %v471 = vpop.xlane.xlu0 %470
    %472 = vadd.xlane.f32.xlu0 %v465
    %v473 = vpop.xlane.xlu0 %472
    %474 = vadd.xlane.f32.xlu0 %v467
    %v475 = vpop.xlane.xlu0 %474
    %476 = vadd.xlane.f32.xlu0 %v469
    %v477 = vpop.xlane.xlu0 %476
    %v478 = vrcp.pop %v471
    %v479 = vrcp.pop %v473
    %v480 = vrcp.pop %v475
    %v481 = vrcp.pop %v477
    %v482 = vmul.f32 %v463, %v478
    %v483 = vmul.f32 %v465, %v479
    %v484 = vmul.f32 %v467, %v480
    %v485 = vmul.f32 %v469, %v481
    %486 = vst [vmem:[#allocation10] sm:$0xff] %v482
    %487 = vst [vmem:[#allocation10 + $0x8] sm:$0xff] %v483
    %488 = vst [vmem:[#allocation10 + $0x10] sm:$0xff] %v484
    %489 = vst [vmem:[#allocation10 + $0x18] sm:$0xff] %v485
    // Predicated region
    $region46: #{tpu_custom_call.1} parent=1 // pred_check
      _
    $region47: #{tpu_custom_call.1} parent=1 // pred_check_branch
      %491 = sbr.rel (0) target = $region49
    $region48: #{tpu_custom_call.1} parent=1 // pred_region
      %s493 = ssub.s32 512, 512
      %494 = vsyncadd [#allocation4], %s493
      %s495 = sshll.u32 [#allocation10], 4
      %s496 = int_to_ptr.vmem [resolvable:$true] %s495
      %501 = dma.vmem_to_hbm [thread:$0]  %s496, 512, %s7, [#allocation4], 128, 128, 8
    $region49: #{tpu_custom_call.1} parent=1 // pred_fallthru
      _
    // Predicated region
    $region50: #{tpu_custom_call.1} parent=1 // pred_check
      _
    $region51: #{tpu_custom_call.1} parent=1 // pred_check_branch
      %503 = sbr.rel (0) target = $region53
    $region52: #{tpu_custom_call.1} parent=1 // pred_region
      %504 = dma.done [#allocation4], 512
    $region53: #{tpu_custom_call.1} parent=1 // pred_fallthru
      _
    %505 = vsyncpa [#allocation3], 1
    %506 = vsyncpa [#allocation6], 1
    %507 = vsyncpa [#allocation9], 1
    %508 = vsyncpa [#allocation4], 1

</llo_original>
